<compile_context>
chip_gen: v5e
topology: v5e:2x2
jax: 0.10.0
libtpu: 0.0.40
codegen_flags: <defaults>
</compile_context>

<pallas_src>
import math
import functools

import jax
import jax.numpy as jnp
from jax.experimental import pallas as pl
from jax.experimental.pallas import tpu as pltpu

LANES = 128


def _cdiv(a: int, b: int) -> int:
    return -(-a // b)


def _round_up(x: int, m: int) -> int:
    return _cdiv(x, m) * m


def _default_tile_bytes() -> int:
    # ~2 MiB keeps x+out double buffers (4x tile) under v5e's 16 MiB scoped-VMEM
    # default; v6e/v7x have more headroom & HBM bandwidth, so amortize per-step
    # overhead with a bigger tile.
    try:
        kind = jax.devices()[0].device_kind.lower()
    except Exception:
        return 2 * 1024 * 1024
    if "v6" in kind or "v7" in kind:
        return 4 * 1024 * 1024
    return 2 * 1024 * 1024


# ----------------------------------------------------------------------------
# pe buffer construction (matches the PyTorch __init__ exactly)
# ----------------------------------------------------------------------------
def make_positional_encoding(d_model: int, max_len: int = 20) -> jnp.ndarray:
    position = jnp.arange(0, max_len, dtype=jnp.float32)[:, None]             # (max_len, 1)
    div_term = jnp.exp(jnp.arange(0, d_model, 2, dtype=jnp.float32)
                       * (-math.log(10000.0) / d_model))                      # (d_model/2,)
    pe = jnp.zeros((max_len, d_model), dtype=jnp.float32)
    pe = pe.at[:, 0::2].set(jnp.sin(position * div_term))
    pe = pe.at[:, 1::2].set(jnp.cos(position * div_term))
    # unsqueeze(0).transpose(0, 1) -> (max_len, 1, d_model)
    return pe[:, None, :]


# ----------------------------------------------------------------------------
# Kernels
# ----------------------------------------------------------------------------
def _pe_add_kernel(x_ref, pe_ref, o_ref):
    # Eval mode: dropout == identity.  pe (tT, 1, H) broadcasts over the batch
    # sublanes of x (tT, tB, H) on the VPU.
    o_ref[...] = (x_ref[...] + pe_ref[...]).astype(o_ref.dtype)


def _pe_add_dropout_kernel(seed_ref, x_ref, pe_ref, o_ref, *,
                           threshold: int, scale: float, total_B: int, total_H: int):
    y = x_ref[...] + pe_ref[...]
    tT, tB, H = x_ref.shape
    t0 = pl.program_id(0) * tT
    b0 = pl.program_id(1) * tB
    shape = (tT, tB, H)
    t_idx = jax.lax.broadcasted_iota(jnp.int32, shape, 0) + t0
    b_idx = jax.lax.broadcasted_iota(jnp.int32, shape, 1) + b0
    h_idx = jax.lax.broadcasted_iota(jnp.int32, shape, 2)
    flat = ((t_idx * total_B + b_idx) * total_H + h_idx).astype(jnp.uint32)

    # Counter-based hash PRNG (murmur3-style fmix32 of global index ^ seed): pure
    # uint32 VPU ops, platform-agnostic, tile-size independent.
    seed = seed_ref[0].astype(jnp.uint32) * jnp.uint32(0x9E3779B9)
    bits = flat ^ seed
    bits = bits * jnp.uint32(0x9E3779B1)
    bits = bits ^ (bits >> 15)
    bits = bits * jnp.uint32(0x85EBCA6B)
    bits = bits ^ (bits >> 13)
    bits = bits * jnp.uint32(0xC2B2AE35)
    bits = bits ^ (bits >> 16)

    keep = bits >= jnp.uint32(threshold)          # P(keep) = 1 - p  (bias < 2^-32)
    scale_c = jnp.asarray(scale, dtype=y.dtype)   # keep the multiply in input dtype
    o_ref[...] = jnp.where(keep, y * scale_c, jnp.zeros_like(y)).astype(o_ref.dtype)
    # TODO(synk): statistically equivalent inverted dropout, but not bit-identical
    # to torch's RNG stream.


# ----------------------------------------------------------------------------
# Wrapper
# ----------------------------------------------------------------------------
def positional_encoding_forward(x: jnp.ndarray,
                                pe: jnp.ndarray,
                                *,
                                dropout_p: float = 0.1,
                                training: bool = False,
                                seed: int = 0,
                                tile_bytes: int | None = None,
                                min_kernel_elems: int = 0) -> jnp.ndarray:
    """x: (T, B, H); pe: (max_len, 1, H) constant buffer (max_len >= T)."""
    T, B, H = x.shape
    pe_t = pe[:T].astype(x.dtype)                 # tiny (T, 1, H)
    N = T * B * H
    use_dropout = training and dropout_p > 0.0

    if use_dropout and dropout_p >= 1.0:
        return jnp.zeros_like(x)
    if not use_dropout and N < min_kernel_elems:
        return x + pe_t                           # let XLA fuse truly tiny eval adds

    itemsize = jnp.dtype(x.dtype).itemsize
    s_unit = max(8, 32 // itemsize)               # 8 f32 / 16 bf16 / 32 int8-fp8
    Hp = _round_up(H, LANES)                      # VMEM footprint uses lane-padded H
    tile_bytes = tile_bytes or _default_tile_bytes()

    col_bytes = T * s_unit * Hp * itemsize        # full-T, s_unit-wide batch column
    if col_bytes <= tile_bytes:
        # Tile the batch axis only; pe block is grid-constant -> resident in VMEM.
        tT = T
        budget_tB = (tile_bytes // (T * Hp * itemsize)) // s_unit * s_unit
        step_tB = _round_up(_cdiv(B, 8), s_unit)  # aim for >= ~8 grid steps on big B
        tB = max(s_unit, min(budget_tB, step_tB))
        if tB >= B:
            tB = B                                # full dim (always a legal block dim)
    else:
        # Long sequences: tile T as well so a block can never exceed tile_bytes.
        tB = B if B <= s_unit else s_unit
        tB_pad = _round_up(tB, s_unit)
        tT = max(1, tile_bytes // (tB_pad * Hp * itemsize))
        tT = min(tT, T)

    grid = (_cdiv(T, tT), _cdiv(B, tB))
    x_spec = pl.BlockSpec((tT, tB, H), lambda t, b: (t, b, 0))
    pe_spec = pl.BlockSpec((tT, 1, H), lambda t, b: (t, 0, 0))   # constant along B
    o_spec = pl.BlockSpec((tT, tB, H), lambda t, b: (t, b, 0))
    out_shape = jax.ShapeDtypeStruct((T, B, H), x.dtype)
    compiler_params = pltpu.CompilerParams(
        dimension_semantics=("parallel", "parallel"))

    if use_dropout:
        threshold = min(int(dropout_p * 4294967296.0), 4294967295)
        scale = 1.0 / (1.0 - dropout_p)
        kernel = functools.partial(_pe_add_dropout_kernel, threshold=threshold,
                                   scale=scale, total_B=B, total_H=H)
        seed_arr = jnp.asarray([seed], dtype=jnp.int32)
        seed_spec = pl.BlockSpec(memory_space=pltpu.MemorySpace.SMEM)
        return pl.pallas_call(
            kernel, out_shape=out_shape, grid=grid,
            in_specs=[seed_spec, x_spec, pe_spec], out_specs=o_spec,
            compiler_params=compiler_params,
        )(seed_arr, x, pe_t)

    return pl.pallas_call(
        _pe_add_kernel, out_shape=out_shape, grid=grid,
        in_specs=[x_spec, pe_spec], out_specs=o_spec,
        compiler_params=compiler_params,
    )(x, pe_t)


# ----------------------------------------------------------------------------
# Demo / self-check
# ----------------------------------------------------------------------------
if __name__ == "__main__":
    dropout_p = 0.1

    # --- Case 1: module-like small shape, H=32 (not lane aligned), eval mode --------
    T, B, H = 8, 2, 32
    x = jax.random.normal(jax.random.PRNGKey(0), (T, B, H), dtype=jnp.float32)
    pe = make_positional_encoding(H, max_len=20)                  # (20, 1, 32)
    out = jax.block_until_ready(
        positional_encoding_forward(x, pe, dropout_p=dropout_p, training=False))
    ref = x + pe[:T]
    assert out.shape == (T, B, H)
    assert jnp.allclose(out, ref, atol=1e-6, rtol=1e-6), "eval path mismatch (H=32)"

    # --- Case 2: lane-dense H=128, batch tiled with a ragged last block -------------
    T2, B2, H2 = 8, 36, 128
    x2 = jax.random.normal(jax.random.PRNGKey(1), (T2, B2, H2), dtype=jnp.float32)
    pe2 = make_positional_encoding(H2, max_len=20)                # (20, 1, 128)
    out2 = jax.block_until_ready(
        positional_encoding_forward(x2, pe2, dropout_p=dropout_p, training=False))
    ref2 = x2 + pe2[:T2]
    assert out2.shape == (T2, B2, H2)
    assert jnp.allclose(out2, ref2, atol=1e-6, rtol=1e-6), "eval path mismatch (H=128)"

    # --- Case 3: bf16 (exercises dtype-aware sublane rounding), eval mode -----------
    x3 = x2.astype(jnp.bfloat16)
    out3 = jax.block_until_ready(
        positional_encoding_forward(x3, pe2, dropout_p=dropout_p, training=False))
    ref3 = x3 + pe2[:T2].astype(jnp.bfloat16)
    assert jnp.allclose(out3.astype(jnp.float32), ref3.astype(jnp.float32),
                        atol=1e-2, rtol=1e-2), "bf16 eval path mismatch"

    # --- Case 4: training mode (inverted dropout) structural check ------------------
    out_tr = jax.block_until_ready(
        positional_encoding_forward(x2, pe2, dropout_p=dropout_p, training=True,
                                    seed=123))
    y = x2 + pe2[:T2]
    scale = 1.0 / (1.0 - dropout_p)
    kept = out_tr != 0
    # kept entries must equal (x+pe)/(1-p); dropped entries are exactly 0
    expected = jnp.where(kept, y * scale, 0.0)
    assert jnp.allclose(out_tr, expected, atol=1e-5, rtol=1e-5), "dropout values mismatch"
    drop_frac = 1.0 - float(jnp.mean(kept.astype(jnp.float32)))
    assert 0.01 <= drop_frac <= 0.30, f"implausible drop fraction {drop_frac}"

    print("KERNEL_OK")
</pallas_src>

<mosaic_0001>
module attributes {stable_mosaic.version = 11 : i64} {
  func.func @_pe_add_kernel(%arg0: i32, %arg1: i32, %arg2: memref<8x2x32xf32, #tpu.memory_space<vmem>>, %arg3: memref<8x1x32xf32, #tpu.memory_space<vmem>>, %arg4: memref<8x2x32xf32, #tpu.memory_space<vmem>>) attributes {dimension_semantics = [#tpu.dimension_semantics<parallel>, #tpu.dimension_semantics<parallel>], iteration_bounds = array<i64: 1, 1>, scalar_prefetch = 0 : i64, scratch_operands = 0 : i64, tpu.core_type = #tpu.core_type<tc>, window_params = [{transform_indices = @transform_0, window_bounds = array<i64: 8, 2, 32>}, {transform_indices = @transform_1, window_bounds = array<i64: 8, 1, 32>}, {transform_indices = @transform_2, window_bounds = array<i64: 8, 2, 32>}]} {
    %c0 = arith.constant 0 : index
    %c0_0 = arith.constant 0 : index
    %c0_1 = arith.constant 0 : index
    %0 = vector.load %arg2[%c0, %c0_0, %c0_1] : memref<8x2x32xf32, #tpu.memory_space<vmem>>, vector<8x2x32xf32>
    %c0_2 = arith.constant 0 : index
    %c0_3 = arith.constant 0 : index
    %c0_4 = arith.constant 0 : index
    %1 = vector.load %arg3[%c0_2, %c0_3, %c0_4] : memref<8x1x32xf32, #tpu.memory_space<vmem>>, vector<8x1x32xf32>
    %2 = vector.broadcast %1 : vector<8x1x32xf32> to vector<8x2x32xf32>
    %3 = arith.addf %0, %2 : vector<8x2x32xf32>
    %c0_5 = arith.constant 0 : index
    %c0_6 = arith.constant 0 : index
    %c0_7 = arith.constant 0 : index
    %4 = vector.load %arg4[%c0_5, %c0_6, %c0_7] : memref<8x2x32xf32, #tpu.memory_space<vmem>>, vector<8x2x32xf32>
    tpu.vector_store %arg4[%c0_5, %c0_6, %c0_7], %3 {strides = array<i32>} : memref<8x2x32xf32, #tpu.memory_space<vmem>>, vector<8x2x32xf32>,
    return
  }
  func.func @transform_0(%arg0: i32, %arg1: i32) -> (i32, i32, i32) {
    %c0_i32 = arith.constant 0 : i32
    %c0_i32_0 = arith.constant 0 : i32
    return %arg0, %arg1, %c0_i32 : i32, i32, i32
  }
  func.func @transform_1(%arg0: i32, %arg1: i32) -> (i32, i32, i32) {
    %c0_i32 = arith.constant 0 : i32
    %c0_i32_0 = arith.constant 0 : i32
    %c0_i32_1 = arith.constant 0 : i32
    return %arg0, %c0_i32, %c0_i32_0 : i32, i32, i32
  }
  func.func @transform_2(%arg0: i32, %arg1: i32) -> (i32, i32, i32) {
    %c0_i32 = arith.constant 0 : i32
    %c0_i32_0 = arith.constant 0 : i32
    return %arg0, %arg1, %c0_i32 : i32, i32, i32
  }
}

</mosaic_0001>

<llo_original>
// kernel: tpu_custom_call.1
$region0: #{tpu_custom_call.1}
  #allocation0 [shape = 'u32[]', space=smem, size = 0x4, offset = 0x4, fixed_abs, tag = 'smem constant byte address 0x4 - core index']
  #allocation1 [shape = 'u32[72,128]{1,0:T(1,128)}', space=vmem, size = 0x9000, scoped, tag = 'internal scratch']
  %s0 = inlined_call_operand.hbm [shape: f32[8,2,32], index: 0, kind: input, shape index: {}]
  %s1 = inlined_call_operand.hbm [shape: f32[8,1,32], index: 1, kind: input, shape index: {}]
  %s2 = inlined_call_operand.hbm [shape: f32[8,2,32], index: 2, kind: output, shape index: {}]
  %s3 = sld [smem:[#allocation0]]
  $region26: #{tpu_custom_call.1} parent=0
    _
  %s5 = ssub.s32 1, %s3
  %s6 = scalar_select 0, %s5, %s3
  $region1: #{tpu_custom_call.1} parent=0
    #allocation2 [shape = 'u8[8192]{0}', space=vmem, size = 0x2000, scoped, tag = 'input window, operand 0, single buffered']
    #allocation3 [shape = 's32[1]{0}', space=sflag, size = 0x4, scoped, tag = 'scoped memory for tpu_custom_call.1']
    #allocation4 [shape = 's32[1]{0}', space=sflag, size = 0x4, scoped, tag = 'scoped memory for tpu_custom_call.1']
    #allocation5 [shape = 'u8[4096]{0}', space=vmem, size = 0x1000, scoped, tag = 'input window, operand 1, single buffered']
    #allocation6 [shape = 's32[1]{0}', space=sflag, size = 0x4, scoped, tag = 'scoped memory for tpu_custom_call.1']
    #allocation7 [shape = 'u8[8192]{0}', space=vmem, size = 0x2000, scoped, tag = 'output window, operand 0, single buffered']
    %7 = vsyncpa [#allocation3], 0
    %8 = vsyncpa [#allocation6], 0
    %9 = vsyncpa [#allocation4], 0
    // Predicated region
    $region2: #{tpu_custom_call.1} parent=1 // pred_check
      _
    $region3: #{tpu_custom_call.1} parent=1 // pred_check_branch
      %11 = sbr.rel (0) target = $region5
    $region4: #{tpu_custom_call.1} parent=1 // pred_region
      %13 = vsyncadd [#allocation3], 0
      %s14 = sshll.u32 %s0, 4
      %s15 = int_to_ptr.hbm [resolvable:$true] %s14
      %s16 = sshll.u32 [#allocation2], 4
      %s17 = int_to_ptr.vmem [resolvable:$true] %s16
      %22 = dma.hbm_to_vmem [thread:$0]  %s15, 256, %s17, [#allocation3], 32, 32, 2
    $region5: #{tpu_custom_call.1} parent=1 // pred_fallthru
      _
    // Predicated region
    $region6: #{tpu_custom_call.1} parent=1 // pred_check
      _
    $region7: #{tpu_custom_call.1} parent=1 // pred_check_branch
      %24 = sbr.rel (0) target = $region9
    $region8: #{tpu_custom_call.1} parent=1 // pred_region
      %26 = vsyncadd [#allocation6], 0
      %s27 = sshll.u32 %s1, 4
      %s28 = int_to_ptr.hbm [resolvable:$true] %s27
      %s29 = sshll.u32 [#allocation5], 4
      %s30 = int_to_ptr.vmem [resolvable:$true] %s29
      %35 = dma.hbm_to_vmem [thread:$0]  %s28, 128, %s30, [#allocation6], 16, 16, 1
    $region9: #{tpu_custom_call.1} parent=1 // pred_fallthru
      _
    // Predicated region
    $region10: #{tpu_custom_call.1} parent=1 // pred_check
      _
    $region11: #{tpu_custom_call.1} parent=1 // pred_check_branch
      %37 = sbr.rel (0) target = $region13
    $region12: #{tpu_custom_call.1} parent=1 // pred_region
      %39 = dma.done [#allocation3], 256
    $region13: #{tpu_custom_call.1} parent=1 // pred_fallthru
      _
    // Predicated region
    $region14: #{tpu_custom_call.1} parent=1 // pred_check
      _
    $region15: #{tpu_custom_call.1} parent=1 // pred_check_branch
      %41 = sbr.rel (0) target = $region17
    $region16: #{tpu_custom_call.1} parent=1 // pred_region
      %43 = dma.done [#allocation6], 128
    $region17: #{tpu_custom_call.1} parent=1 // pred_fallthru
      _
    %v44 = vld [vmem:[#allocation2] sm:$0x3]
    %v45 = vld [vmem:[#allocation2 + $0x2] sm:$0x3]
    %v46 = vld [vmem:[#allocation2 + $0x4] sm:$0x3]
    %v47 = vld [vmem:[#allocation2 + $0x6] sm:$0x3]
    %v48 = vld [vmem:[#allocation2 + $0x8] sm:$0x3]
    %v49 = vld [vmem:[#allocation2 + $0xa] sm:$0x3]
    %v50 = vld [vmem:[#allocation2 + $0xc] sm:$0x3]
    %v51 = vld [vmem:[#allocation2 + $0xe] sm:$0x3]
    %v52 = vld [vmem:[#allocation5] sm:$0x1]
    %v53 = vld [vmem:[#allocation5 + $0x1] sm:$0x1]
    %v54 = vld [vmem:[#allocation5 + $0x2] sm:$0x1]
    %v55 = vld [vmem:[#allocation5 + $0x3] sm:$0x1]
    %v56 = vld [vmem:[#allocation5 + $0x4] sm:$0x1]
    %v57 = vld [vmem:[#allocation5 + $0x5] sm:$0x1]
    %v58 = vld [vmem:[#allocation5 + $0x6] sm:$0x1]
    %v59 = vld [vmem:[#allocation5 + $0x7] sm:$0x1]
    %v68 = vperm.slane %v52, 0
    %v69 = vperm.slane %v53, 0
    %v70 = vperm.slane %v54, 0
    %v71 = vperm.slane %v55, 0
    %v72 = vperm.slane %v56, 0
    %v73 = vperm.slane %v57, 0
    %v74 = vperm.slane %v58, 0
    %v75 = vperm.slane %v59, 0
    %v84 = vadd.f32 %v44, %v68
    %v85 = vadd.f32 %v45, %v69
    %v86 = vadd.f32 %v46, %v70
    %v87 = vadd.f32 %v47, %v71
    %v88 = vadd.f32 %v48, %v72
    %v89 = vadd.f32 %v49, %v73
    %v90 = vadd.f32 %v50, %v74
    %v91 = vadd.f32 %v51, %v75
    %vm92 = vcmask 254976
    %93 = vst.msk [vmem:[#allocation7] sm:$0x3] %vm92, %v84
    %94 = vst.msk [vmem:[#allocation7 + $0x2] sm:$0x3] %vm92, %v85
    %95 = vst.msk [vmem:[#allocation7 + $0x4] sm:$0x3] %vm92, %v86
    %96 = vst.msk [vmem:[#allocation7 + $0x6] sm:$0x3] %vm92, %v87
    %97 = vst.msk [vmem:[#allocation7 + $0x8] sm:$0x3] %vm92, %v88
    %98 = vst.msk [vmem:[#allocation7 + $0xa] sm:$0x3] %vm92, %v89
    %99 = vst.msk [vmem:[#allocation7 + $0xc] sm:$0x3] %vm92, %v90
    %100 = vst.msk [vmem:[#allocation7 + $0xe] sm:$0x3] %vm92, %v91
    // Predicated region
    $region18: #{tpu_custom_call.1} parent=1 // pred_check
      _
    $region19: #{tpu_custom_call.1} parent=1 // pred_check_branch
      %102 = sbr.rel (0) target = $region21
    $region20: #{tpu_custom_call.1} parent=1 // pred_region
      %104 = vsyncadd [#allocation4], 0
      %s105 = sshll.u32 [#allocation7], 4
      %s106 = int_to_ptr.vmem [resolvable:$true] %s105
      %s107 = sshll.u32 %s2, 4
      %s108 = int_to_ptr.hbm [resolvable:$true] %s107
      %113 = dma.vmem_to_hbm [thread:$0]  %s106, 256, %s108, [#allocation4], 32, 32, 2
    $region21: #{tpu_custom_call.1} parent=1 // pred_fallthru
      _
    // Predicated region
    $region22: #{tpu_custom_call.1} parent=1 // pred_check
      _
    $region23: #{tpu_custom_call.1} parent=1 // pred_check_branch
      %115 = sbr.rel (0) target = $region25
    $region24: #{tpu_custom_call.1} parent=1 // pred_region
      %117 = dma.done [#allocation4], 256
    $region25: #{tpu_custom_call.1} parent=1 // pred_fallthru
      _
    %118 = vsyncpa [#allocation3], 1
    %119 = vsyncpa [#allocation6], 1
    %120 = vsyncpa [#allocation4], 1

</llo_original>
